<compile_context>
chip_gen: v6e
topology: v6e:2x2x1
jax: 0.10.0
libtpu: 0.0.40
codegen_flags: <defaults>
</compile_context>

<pallas_src>
import math
from functools import partial

import jax
import jax.numpy as jnp
from jax.experimental import pallas as pl
from jax.experimental.pallas import tpu as pltpu

INPUT_SIZE = 5
OUTPUT_SIZE = 1

LANES = 128
# Double-buffered VMEM footprint per step ~= 128 * tb bytes (x block and out
# block each pad to 8 sublanes, two buffers each).  256K lanes -> ~32 MiB,
# which fits the 48 MiB scoped limit we request below on every generation
# (v5e/v6e: 128 MiB physical, v7x: 64 MiB physical).
MAX_BLOCK_B = 256 * 1024
VMEM_LIMIT_BYTES = 48 << 20

# Below this batch size, skip the Pallas kernel entirely (dispatch-dominated).
FASTPATH_MAX_B = 16 * 1024


def _round_up(n, m):
    return ((n + m - 1) // m) * m


def _choose_blocks(batch, max_block_b):
    """Balanced lane-aligned batch tiles; >=2 grid steps when B allows so the
    parallel axis can split across v7x's two TensorCores."""
    b_lanes = _round_up(max(batch, 1), LANES)
    n_blocks = -(-b_lanes // max_block_b)  # ceil div
    if b_lanes >= 2 * LANES:
        n_blocks = max(n_blocks, 2)
    tb = _round_up(-(-b_lanes // n_blocks), LANES)
    return n_blocks, tb


def _linear_kernel(w_ref, b_ref, x_ref, o_ref):
    # w_ref: VMEM (IN, 1) f32 weight column (whole array, resident)
    # b_ref: SMEM (1,) f32 bias scalar
    # x_ref: VMEM (IN, TB) f32, batch on the 128-wide lane axis
    # o_ref: VMEM (1, TB) f32, lane-dense output slab
    prod = x_ref[...] * w_ref[...]  # one full-vreg VPU multiply (lane broadcast of w)
    acc = jnp.sum(prod, axis=0, keepdims=True)  # cross-sublane reduce -> XLU slot
    o_ref[...] = (acc + b_ref[0]).astype(o_ref.dtype)


@partial(jax.jit, static_argnames=("max_block_b", "force_kernel"))
def benchmark1_forward(x, weight, bias, *, max_block_b=MAX_BLOCK_B,
                       force_kernel=False):
    """x: (B, INPUT_SIZE) f32, weight: (1, INPUT_SIZE) f32 (PyTorch layout),
    bias: (1,) f32  ->  (B, 1) f32.  Same math as nn.Linear: y = x @ W.T + b."""
    B = x.shape[0]

    # Small-batch fast path: plain fused XLA beats any standalone kernel here.
    if not force_kernel and B < FASTPATH_MAX_B:
        return x @ weight.T + bias

    n_blocks, tb = _choose_blocks(B, max_block_b)
    b_pad = n_blocks * tb

    # Lane-dense layout: batch on the lane (last) axis.  Under jit the
    # transpose + pad fuse with the kernel launch into one program.
    # TODO(synk): if the producer can emit x already as (IN, B), this extra
    # HBM pass disappears entirely.
    x_t = x.T  # (IN, B)
    if b_pad != B:
        x_t = jnp.pad(x_t, ((0, 0), (0, b_pad - B)))

    cost = pl.CostEstimate(
        flops=2 * INPUT_SIZE * b_pad,
        transcendentals=0,
        bytes_accessed=4 * (INPUT_SIZE * b_pad + b_pad + INPUT_SIZE + 1),
    )

    out_t = pl.pallas_call(
        _linear_kernel,
        out_shape=jax.ShapeDtypeStruct((1, b_pad), x.dtype),
        grid=(n_blocks,),
        in_specs=[
            # (IN, 1) weight column: whole-array resident in VMEM.
            pl.BlockSpec(memory_space=pltpu.MemorySpace.VMEM),
            # bias scalar: scalar path.
            pl.BlockSpec(memory_space=pltpu.MemorySpace.SMEM),
            # Activations: (IN, TB) blocks, batch tiled along the grid.
            pl.BlockSpec((INPUT_SIZE, tb), lambda i: (0, i)),
        ],
        out_specs=pl.BlockSpec((1, tb), lambda i: (0, i)),
        compiler_params=pltpu.CompilerParams(
            # Batch blocks are independent -> split across v7x's 2 TensorCores.
            dimension_semantics=("parallel",),
            vmem_limit_bytes=VMEM_LIMIT_BYTES,
        ),
        cost_estimate=cost,
    )(weight.reshape(INPUT_SIZE, 1), bias.reshape(1), x_t)

    return out_t[:, :B].T  # (B, 1)


def init_params(key):
    # Deterministic init mirroring PyTorch's default nn.Linear init:
    # U(-1/sqrt(fan_in), 1/sqrt(fan_in)) for both weight and bias.
    k_w, k_b = jax.random.split(key)
    bound = 1.0 / math.sqrt(INPUT_SIZE)
    weight = jax.random.uniform(
        k_w, (OUTPUT_SIZE, INPUT_SIZE), jnp.float32, minval=-bound, maxval=bound
    )
    bias = jax.random.uniform(
        k_b, (OUTPUT_SIZE,), jnp.float32, minval=-bound, maxval=bound
    )
    return weight, bias


if __name__ == "__main__":
    key = jax.random.PRNGKey(0)
    k_param, k_x1, k_x2 = jax.random.split(key, 3)

    weight, bias = init_params(k_param)

    # 1) Small batch, kernel path forced (single grid step, padded to 128 lanes).
    batch = 8
    x = jax.random.normal(k_x1, (batch, INPUT_SIZE), dtype=jnp.float32)
    out = jax.block_until_ready(
        benchmark1_forward(x, weight, bias, force_kernel=True)
    )
    ref = x @ weight.T + bias
    assert out.shape == (batch, OUTPUT_SIZE)
    assert jnp.allclose(out, ref, atol=1e-5, rtol=1e-5)

    # 2) Multi-step grid path with a small forced block size (3 blocks of 128).
    batch2 = 300
    x2 = jax.random.normal(k_x2, (batch2, INPUT_SIZE), dtype=jnp.float32)
    out2 = jax.block_until_ready(
        benchmark1_forward(x2, weight, bias, max_block_b=128, force_kernel=True)
    )
    ref2 = x2 @ weight.T + bias
    assert out2.shape == (batch2, OUTPUT_SIZE)
    assert jnp.allclose(out2, ref2, atol=1e-5, rtol=1e-5)

    # 3) Default call (small B -> fused-XLA fast path) must match too.
    out3 = jax.block_until_ready(benchmark1_forward(x, weight, bias))
    assert jnp.allclose(out3, ref, atol=1e-5, rtol=1e-5)

    print("KERNEL_OK")
</pallas_src>

<mosaic_0001>
module attributes {stable_mosaic.version = 11 : i64} {
  func.func @_linear_kernel(%arg0: i32, %arg1: memref<5x1xf32, #tpu.memory_space<vmem>>, %arg2: memref<1xf32, #tpu.memory_space<smem>>, %arg3: memref<5x128xf32, #tpu.memory_space<vmem>>, %arg4: memref<1x128xf32, #tpu.memory_space<vmem>>) attributes {dimension_semantics = [#tpu.dimension_semantics<parallel>], iteration_bounds = array<i64: 1>, scalar_prefetch = 0 : i64, scratch_operands = 0 : i64, tpu.core_type = #tpu.core_type<tc>, window_params = [{pipeline_mode = #tpu.pipeline_mode<synchronous>, transform_indices = @transform_0, window_bounds = array<i64: 5, 1>}, {transform_indices = @transform_1, window_bounds = array<i64: 1>}, {transform_indices = @transform_2, window_bounds = array<i64: 5, 128>}, {transform_indices = @transform_3, window_bounds = array<i64: 1, 128>}]} {
    %c0 = arith.constant 0 : index
    %c0_0 = arith.constant 0 : index
    %0 = vector.load %arg3[%c0, %c0_0] : memref<5x128xf32, #tpu.memory_space<vmem>>, vector<5x128xf32>
    %c0_1 = arith.constant 0 : index
    %c0_2 = arith.constant 0 : index
    %1 = vector.load %arg1[%c0_1, %c0_2] : memref<5x1xf32, #tpu.memory_space<vmem>>, vector<5x1xf32>
    %2 = vector.broadcast %1 : vector<5x1xf32> to vector<5x128xf32>
    %3 = arith.mulf %0, %2 : vector<5x128xf32>
    %cst = arith.constant dense<0.000000e+00> : vector<128xf32>
    %4 = vector.multi_reduction <add>, %3, %cst [0] : vector<5x128xf32> to vector<128xf32>
    %5 = vector.shape_cast %4 : vector<128xf32> to vector<1x128xf32>
    %c0_3 = arith.constant 0 : index
    %6 = memref.load %arg2[%c0_3] : memref<1xf32, #tpu.memory_space<smem>>
    %7 = vector.broadcast %6 : f32 to vector<1x128xf32>
    %8 = arith.addf %5, %7 : vector<1x128xf32>
    %c0_4 = arith.constant 0 : index
    %c0_5 = arith.constant 0 : index
    %9 = vector.load %arg4[%c0_4, %c0_5] : memref<1x128xf32, #tpu.memory_space<vmem>>, vector<1x128xf32>
    tpu.vector_store %arg4[%c0_4, %c0_5], %8 {strides = array<i32>} : memref<1x128xf32, #tpu.memory_space<vmem>>, vector<1x128xf32>,
    return
  }
  func.func @transform_0(%arg0: i32) -> (i32, i32) {
    %c0_i32 = arith.constant 0 : i32
    %c0_i32_0 = arith.constant 0 : i32
    %c0_i32_1 = arith.constant 0 : i32
    return %c0_i32, %c0_i32_0 : i32, i32
  }
  func.func @transform_1(%arg0: i32) -> i32 {
    %c0_i32 = arith.constant 0 : i32
    %c0_i32_0 = arith.constant 0 : i32
    return %c0_i32 : i32
  }
  func.func @transform_2(%arg0: i32) -> (i32, i32) {
    %c0_i32 = arith.constant 0 : i32
    %c0_i32_0 = arith.constant 0 : i32
    return %c0_i32, %arg0 : i32, i32
  }
  func.func @transform_3(%arg0: i32) -> (i32, i32) {
    %c0_i32 = arith.constant 0 : i32
    %c0_i32_0 = arith.constant 0 : i32
    return %c0_i32, %arg0 : i32, i32
  }
}

</mosaic_0001>

<llo_original>
// kernel: benchmark1_forward.1
$region0: #{benchmark1_forward.1}
  #allocation0 [shape = 'u32[]', space=smem, size = 0x4, offset = 0x4, fixed_abs, tag = 'smem constant byte address 0x4 - core index']
  #allocation1 [shape = 'u32[144,128]{1,0:T(1,128)}', space=vmem, size = 0x12000, scoped, tag = 'internal scratch']
  #allocation2 [shape = 'f32[1]{0:T(128)S(6)}', space=smem, size = 0x200, scoped, tag = 'scoped memory for benchmark1_forward.1']
  %s0 = inlined_call_operand.vmem [shape: f32[5,1], index: 0, kind: input, shape index: {}]
  %s1 = inlined_call_operand.<no memory space> [shape: f32[1], index: 1, kind: input, shape index: {}]
  %s2 = inlined_call_operand.vmem [shape: f32[5,128], index: 2, kind: input, shape index: {}]
  %s3 = inlined_call_operand.vmem [shape: f32[1,128], index: 3, kind: output, shape index: {}]
  %s4 = sld [smem:[#allocation0]]
  $region22: #{benchmark1_forward.1} parent=0
    _
  %s6 = ssub.s32 1, %s4
  %s7 = scalar_select 0, %s6, %s4
  %8 = sst [smem:[#allocation2]] %s1
  // Predicated region
  $region2: #{benchmark1_forward.1} parent=0 // pred_check
    _
  $region3: #{benchmark1_forward.1} parent=0 // pred_check_branch
    %10 = sbr.rel (0) target = $region5
  $region4: #{benchmark1_forward.1} parent=0 // pred_region
    _
  $region5: #{benchmark1_forward.1} parent=0 // pred_fallthru
    _
  // Predicated region
  $region6: #{benchmark1_forward.1} parent=0 // pred_check
    _
  $region7: #{benchmark1_forward.1} parent=0 // pred_check_branch
    %12 = sbr.rel (0) target = $region9
  $region8: #{benchmark1_forward.1} parent=0 // pred_region
    _
  $region9: #{benchmark1_forward.1} parent=0 // pred_fallthru
    _
  // Predicated region
  $region10: #{benchmark1_forward.1} parent=0 // pred_check
    _
  $region11: #{benchmark1_forward.1} parent=0 // pred_check_branch
    %14 = sbr.rel (0) target = $region13
  $region12: #{benchmark1_forward.1} parent=0 // pred_region
    _
  $region13: #{benchmark1_forward.1} parent=0 // pred_fallthru
    _
  %v15 = vld [vmem:[%s2] sm:$0x1f]
  %v16 = vld [vmem:[%s0] sm:$0x1f]
  %18 = vset.pattern.permute.xlu0 0
  %19 = vperm.xlu0 %18, %v16
  %v20 = vpop.permute.xlu0 %19
  %v22 = vmul.f32 %v15, %v20
  %vm23 = vcmask 1044480
  %v24 = vsel %vm23, %v22, 0.0
  %v25 = vrot.slane %v24, 4
  %v26 = vadd.f32 %v24, %v25
  %v27 = vrot.slane %v26, 2
  %v28 = vadd.f32 %v26, %v27
  %v29 = vrot.slane %v28, 1
  %v30 = vadd.f32 %v28, %v29
  %s31 = sld [smem:[#allocation2]]
  %v32 = vstv %s31
  %v33 = vadd.f32 %v30, %v32
  %34 = vst [vmem:[%s3] sm:$0x1] %v33
  // Predicated region
  $region14: #{benchmark1_forward.1} parent=0 // pred_check
    _
  $region15: #{benchmark1_forward.1} parent=0 // pred_check_branch
    %36 = sbr.rel (0) target = $region17
  $region16: #{benchmark1_forward.1} parent=0 // pred_region
    _
  $region17: #{benchmark1_forward.1} parent=0 // pred_fallthru
    _
  // Predicated region
  $region18: #{benchmark1_forward.1} parent=0 // pred_check
    _
  $region19: #{benchmark1_forward.1} parent=0 // pred_check_branch
    %38 = sbr.rel (0) target = $region21
  $region20: #{benchmark1_forward.1} parent=0 // pred_region
    _
  $region21: #{benchmark1_forward.1} parent=0 // pred_fallthru
    _

</llo_original>
